<compile_context>
chip_gen: v7x
topology: tpu7x:2x2x1
jax: 0.10.0
libtpu: 0.0.40
codegen_flags: <defaults>
</compile_context>

<pallas_src>
import jax
import jax.numpy as jnp
import numpy as np
from jax.experimental import pallas as pl
from jax.experimental.pallas import tpu as pltpu


def _round_up(x, m):
    return (x + m - 1) // m * m


def _cdiv(a, b):
    return (a + b - 1) // b


def _tpu_vmem_and_cores():
    """Best-effort generation query: (per-core VMEM bytes, TensorCores per chip)."""
    vmem_cap = 64 * 1024 * 1024          # assume the smallest (v7x per-TC) if unknown
    n_cores = 1
    try:
        vmem_cap = int(pltpu.get_tpu_info().vmem_capacity_bytes)
    except Exception:
        pass
    try:
        kind = jax.devices()[0].device_kind.lower()
        if ("v4" in kind) or ("v5p" in kind) or ("7" in kind):
            n_cores = 2                  # megacore / dual-TensorCore chips
    except Exception:
        pass
    return vmem_cap, n_cores


def _adapter_kernel(ids_ref, a_t_ref, b_t_ref, scale_ref, o_ref, emb_ref):
    # ids_ref   : (Tp,)    int32 SMEM   all token ids (scalar-prefetched)
    # a_t_ref   : (V, Rp)  f32   VMEM   lora_a quant codes, pre-transposed, resident
    # b_t_ref   : (Rp, Ep) bf16  VMEM   lora_b quant codes, pre-transposed, resident
    # scale_ref : (1, 1)   f32   SMEM   folded scale = scale_a * scale_b
    # o_ref     : (TB, Ep) f32   VMEM   output tile
    # emb_ref   : (TB, Rp) f32   VMEM   scratch for gathered embedding rows
    tb = o_ref.shape[0]
    base = pl.program_id(0) * tb

    # Row gather: ids read scalar-wise from SMEM, each row a (1, Rp) dynamic
    # sublane slice of the resident table (f32 path -> plain 32-bit slices).
    @pl.loop(0, tb, unroll=(tb <= 32))
    def _(t):
        row = ids_ref[base + t]
        emb_ref[pl.ds(t, 1), :] = a_t_ref[pl.ds(row, 1), :]

    # Low-rank projection on the MXU: bf16 operands (quant codes exact in bf16),
    # f32 accumulation. Single folded dequant scale applied once (f32 VPU).
    out = jnp.dot(emb_ref[...].astype(jnp.bfloat16), b_t_ref[...],
                  preferred_element_type=jnp.float32)
    o_ref[...] = out * scale_ref[0, 0]


def quant_embedding_lowrank_adapter(x, a_q, scale_a, b_q, scale_b, *, token_block=256):
    """x: (B, S) int ids; a_q: (rank, num_embeddings); b_q: (embedding_dim, rank)."""
    B, S = x.shape
    R, V = a_q.shape
    E, R2 = b_q.shape
    assert R2 == R

    Rp = _round_up(R, 8)          # pad rank for sublane alignment (zeros: harmless)
    Ep = _round_up(E, 128)        # lane-dense output stores (unmasked vst)

    # Hoisted, runs once outside the grid:
    #  * lora_a^T kept f32 so the in-kernel dynamic row gather uses the plain
    #    32-bit sublane-slice path (int codes are exact in f32).
    #  * lora_b^T kept bf16 (int8-range codes exact in bf16; do NOT use fp8 on v7x).
    a_t = jnp.zeros((V, Rp), jnp.float32).at[:, :R].set(
        jnp.asarray(a_q, jnp.float32).T)
    b_t = jnp.zeros((Rp, Ep), jnp.bfloat16).at[:R, :E].set(
        jnp.asarray(b_q, jnp.float32).T.astype(jnp.bfloat16))

    # Fold the two per-tensor scales into one scalar applied once in the kernel.
    # (Only valid for per-tensor quantization.)
    scale = jnp.reshape(jnp.asarray(scale_a, jnp.float32) *
                        jnp.asarray(scale_b, jnp.float32), (1, 1))

    ids = x.reshape(-1).astype(jnp.int32)
    T = ids.shape[0]

    # ---- generation-aware sizing -------------------------------------------
    vmem_cap, n_cores = _tpu_vmem_and_cores()
    vmem_limit = min(vmem_cap * 3 // 4, 96 * 1024 * 1024)   # ~48 MiB v7x, 96 MiB v5e/v6e
    budget = int(vmem_limit * 0.85)

    # Conservative accounting: tables counted double-buffered in case the
    # single-buffer request is not honored; per-token = scratch row + bf16 copy
    # + output tile (double-buffered) + pre-store value.
    table_bytes = 2 * (V * Rp * 4 + Rp * Ep * 2)
    per_tok_bytes = Rp * 4 + Rp * 2 + 3 * Ep * 4 + 8
    max_tb = max(8, ((budget - table_bytes) // max(per_tok_bytes, 1)) // 8 * 8)

    tb = max(8, min(int(token_block), _round_up(T, 8)))
    tb = min(_round_up(tb, 8), max_tb)

    # Dual-TC chips (v7x, v4/v5p megacore): keep an even number (>=2) of grid
    # steps so the "parallel" axis load-balances both cores. Single-TC chips
    # (v5e/v6e) keep one big tile (splitting only adds per-step overhead).
    if n_cores >= 2 and T > 8:
        steps = _cdiv(T, tb)
        if steps < 2 or steps % 2:
            steps = max(2, steps + (steps % 2))
            tb = max(8, _round_up(_cdiv(T, steps), 8))

    Tp = _round_up(T, tb)
    ids = jnp.pad(ids, (0, Tp - T))   # pad with id 0 (valid row; padded rows sliced off)

    def build(single_buffer_tables):
        tbl_kw = dict(pipeline_mode=pl.Buffered(1)) if single_buffer_tables else {}
        grid_spec = pltpu.PrefetchScalarGridSpec(
            num_scalar_prefetch=1,                    # ids -> SMEM
            grid=(Tp // tb,),
            in_specs=[
                pl.BlockSpec((V, Rp), lambda i, ids_s: (0, 0), **tbl_kw),   # lora_a^T (resident)
                pl.BlockSpec((Rp, Ep), lambda i, ids_s: (0, 0), **tbl_kw),  # lora_b^T (resident)
                pl.BlockSpec(memory_space=pltpu.MemorySpace.SMEM),          # folded scale
            ],
            out_specs=pl.BlockSpec((tb, Ep), lambda i, ids_s: (i, 0)),
            scratch_shapes=[pltpu.VMEM((tb, Rp), jnp.float32)],
        )
        return pl.pallas_call(
            _adapter_kernel,
            out_shape=jax.ShapeDtypeStruct((Tp, Ep), jnp.float32),
            grid_spec=grid_spec,
            compiler_params=pltpu.CompilerParams(
                dimension_semantics=("parallel",),
                vmem_limit_bytes=int(vmem_limit)),
        )

    try:
        out = jax.block_until_ready(build(True)(ids, a_t, b_t, scale))
    except Exception:
        # Fallback: identical kernel with default (double) buffering of the tables.
        out = build(False)(ids, a_t, b_t, scale)

    return out[:T, :E].reshape(B, S, E)


def _make_quantized(key, shape):
    """Deterministic synthetic 'quantized tensor': int8-range codes + per-tensor scale."""
    w = jax.random.normal(key, shape, dtype=jnp.float32) * 0.1
    scale = jnp.maximum(jnp.max(jnp.abs(w)), 1e-8) / 127.0
    q = jnp.round(w / scale)          # integer codes kept in a float container
    return q, scale


if __name__ == "__main__":
    num_embeddings, embedding_dim, rank = 64, 32, 8
    batch, seq = 2, 8

    key = jax.random.PRNGKey(0)
    ka, kb, kx = jax.random.split(key, 3)

    a_q, scale_a = _make_quantized(ka, (rank, num_embeddings))   # lora_a
    b_q, scale_b = _make_quantized(kb, (embedding_dim, rank))    # lora_b
    x = jax.random.randint(kx, (batch, seq), 0, num_embeddings, dtype=jnp.int32)

    out = quant_embedding_lowrank_adapter(x, a_q, scale_a, b_q, scale_b)
    out = jax.block_until_ready(out)

    # Pure-JAX reference of the PyTorch forward (dequant -> embedding -> linear).
    a_deq = a_q * scale_a                         # (rank, V)
    b_deq = b_q * scale_b                         # (E, rank)
    ref = jnp.take(a_deq.T, x, axis=0) @ b_deq.T  # (B, S, E)

    assert out.shape == (batch, seq, embedding_dim)
    np.testing.assert_allclose(np.asarray(out), np.asarray(ref), rtol=1e-5, atol=1e-5)
    print("KERNEL_OK")
</pallas_src>

<mosaic_0001>
module attributes {stable_mosaic.version = 11 : i64} {
  func.func @_adapter_kernel(%arg0: i32, %arg1: memref<16xi32, #tpu.memory_space<smem>>, %arg2: memref<64x8xf32, #tpu.memory_space<vmem>>, %arg3: memref<8x128xbf16, #tpu.memory_space<vmem>>, %arg4: memref<1x1xf32, #tpu.memory_space<smem>>, %arg5: memref<16x128xf32, #tpu.memory_space<vmem>>, %arg6: memref<16x8xf32, #tpu.memory_space<vmem>>) attributes {dimension_semantics = [#tpu.dimension_semantics<parallel>], iteration_bounds = array<i64: 1>, scalar_prefetch = 1 : i64, scratch_operands = 1 : i64, tpu.core_type = #tpu.core_type<tc>, window_params = [{pipeline_mode = #tpu.pipeline_mode<synchronous>, transform_indices = @transform_0, window_bounds = array<i64: 64, 8>}, {pipeline_mode = #tpu.pipeline_mode<synchronous>, transform_indices = @transform_1, window_bounds = array<i64: 8, 128>}, {transform_indices = @transform_2, window_bounds = array<i64: 1, 1>}, {transform_indices = @transform_3, window_bounds = array<i64: 16, 128>}]} {
    %c16_i32 = arith.constant 16 : i32
    %0 = arith.muli %arg0, %c16_i32 : i32
    %c0_i32 = arith.constant 0 : i32
    %c1_i32 = arith.constant 1 : i32
    %1 = arith.muli %c0_i32, %c1_i32 : i32
    %c0_i32_0 = arith.constant 0 : i32
    %2 = arith.addi %c0_i32_0, %1 : i32
    %3 = arith.addi %0, %2 : i32
    %4 = arith.index_cast %3 : i32 to index
    %5 = memref.load %arg1[%4] : memref<16xi32, #tpu.memory_space<smem>>
    %6 = arith.index_cast %5 : i32 to index
    %c0 = arith.constant 0 : index
    %7 = vector.load %arg2[%6, %c0] : memref<64x8xf32, #tpu.memory_space<vmem>>, vector<1x8xf32>
    %8 = arith.index_cast %2 : i32 to index
    %c0_1 = arith.constant 0 : index
    %9 = vector.load %arg6[%8, %c0_1] : memref<16x8xf32, #tpu.memory_space<vmem>>, vector<1x8xf32>
    tpu.vector_store %arg6[%8, %c0_1], %7 {strides = array<i32>} : memref<16x8xf32, #tpu.memory_space<vmem>>, vector<1x8xf32>,
    %c1_i32_2 = arith.constant 1 : i32
    %c1_i32_3 = arith.constant 1 : i32
    %10 = arith.muli %c1_i32_2, %c1_i32_3 : i32
    %c0_i32_4 = arith.constant 0 : i32
    %11 = arith.addi %c0_i32_4, %10 : i32
    %12 = arith.addi %0, %11 : i32
    %13 = arith.index_cast %12 : i32 to index
    %14 = memref.load %arg1[%13] : memref<16xi32, #tpu.memory_space<smem>>
    %15 = arith.index_cast %14 : i32 to index
    %c0_5 = arith.constant 0 : index
    %16 = vector.load %arg2[%15, %c0_5] : memref<64x8xf32, #tpu.memory_space<vmem>>, vector<1x8xf32>
    %17 = arith.index_cast %11 : i32 to index
    %c0_6 = arith.constant 0 : index
    %18 = vector.load %arg6[%17, %c0_6] : memref<16x8xf32, #tpu.memory_space<vmem>>, vector<1x8xf32>
    tpu.vector_store %arg6[%17, %c0_6], %16 {strides = array<i32>} : memref<16x8xf32, #tpu.memory_space<vmem>>, vector<1x8xf32>,
    %c2_i32 = arith.constant 2 : i32
    %c1_i32_7 = arith.constant 1 : i32
    %19 = arith.muli %c2_i32, %c1_i32_7 : i32
    %c0_i32_8 = arith.constant 0 : i32
    %20 = arith.addi %c0_i32_8, %19 : i32
    %21 = arith.addi %0, %20 : i32
    %22 = arith.index_cast %21 : i32 to index
    %23 = memref.load %arg1[%22] : memref<16xi32, #tpu.memory_space<smem>>
    %24 = arith.index_cast %23 : i32 to index
    %c0_9 = arith.constant 0 : index
    %25 = vector.load %arg2[%24, %c0_9] : memref<64x8xf32, #tpu.memory_space<vmem>>, vector<1x8xf32>
    %26 = arith.index_cast %20 : i32 to index
    %c0_10 = arith.constant 0 : index
    %27 = vector.load %arg6[%26, %c0_10] : memref<16x8xf32, #tpu.memory_space<vmem>>, vector<1x8xf32>
    tpu.vector_store %arg6[%26, %c0_10], %25 {strides = array<i32>} : memref<16x8xf32, #tpu.memory_space<vmem>>, vector<1x8xf32>,
    %c3_i32 = arith.constant 3 : i32
    %c1_i32_11 = arith.constant 1 : i32
    %28 = arith.muli %c3_i32, %c1_i32_11 : i32
    %c0_i32_12 = arith.constant 0 : i32
    %29 = arith.addi %c0_i32_12, %28 : i32
    %30 = arith.addi %0, %29 : i32
    %31 = arith.index_cast %30 : i32 to index
    %32 = memref.load %arg1[%31] : memref<16xi32, #tpu.memory_space<smem>>
    %33 = arith.index_cast %32 : i32 to index
    %c0_13 = arith.constant 0 : index
    %34 = vector.load %arg2[%33, %c0_13] : memref<64x8xf32, #tpu.memory_space<vmem>>, vector<1x8xf32>
    %35 = arith.index_cast %29 : i32 to index
    %c0_14 = arith.constant 0 : index
    %36 = vector.load %arg6[%35, %c0_14] : memref<16x8xf32, #tpu.memory_space<vmem>>, vector<1x8xf32>
    tpu.vector_store %arg6[%35, %c0_14], %34 {strides = array<i32>} : memref<16x8xf32, #tpu.memory_space<vmem>>, vector<1x8xf32>,
    %c4_i32 = arith.constant 4 : i32
    %c1_i32_15 = arith.constant 1 : i32
    %37 = arith.muli %c4_i32, %c1_i32_15 : i32
    %c0_i32_16 = arith.constant 0 : i32
    %38 = arith.addi %c0_i32_16, %37 : i32
    %39 = arith.addi %0, %38 : i32
    %40 = arith.index_cast %39 : i32 to index
    %41 = memref.load %arg1[%40] : memref<16xi32, #tpu.memory_space<smem>>
    %42 = arith.index_cast %41 : i32 to index
    %c0_17 = arith.constant 0 : index
    %43 = vector.load %arg2[%42, %c0_17] : memref<64x8xf32, #tpu.memory_space<vmem>>, vector<1x8xf32>
    %44 = arith.index_cast %38 : i32 to index
    %c0_18 = arith.constant 0 : index
    %45 = vector.load %arg6[%44, %c0_18] : memref<16x8xf32, #tpu.memory_space<vmem>>, vector<1x8xf32>
    tpu.vector_store %arg6[%44, %c0_18], %43 {strides = array<i32>} : memref<16x8xf32, #tpu.memory_space<vmem>>, vector<1x8xf32>,
    %c5_i32 = arith.constant 5 : i32
    %c1_i32_19 = arith.constant 1 : i32
    %46 = arith.muli %c5_i32, %c1_i32_19 : i32
    %c0_i32_20 = arith.constant 0 : i32
    %47 = arith.addi %c0_i32_20, %46 : i32
    %48 = arith.addi %0, %47 : i32
    %49 = arith.index_cast %48 : i32 to index
    %50 = memref.load %arg1[%49] : memref<16xi32, #tpu.memory_space<smem>>
    %51 = arith.index_cast %50 : i32 to index
    %c0_21 = arith.constant 0 : index
    %52 = vector.load %arg2[%51, %c0_21] : memref<64x8xf32, #tpu.memory_space<vmem>>, vector<1x8xf32>
    %53 = arith.index_cast %47 : i32 to index
    %c0_22 = arith.constant 0 : index
    %54 = vector.load %arg6[%53, %c0_22] : memref<16x8xf32, #tpu.memory_space<vmem>>, vector<1x8xf32>
    tpu.vector_store %arg6[%53, %c0_22], %52 {strides = array<i32>} : memref<16x8xf32, #tpu.memory_space<vmem>>, vector<1x8xf32>,
    %c6_i32 = arith.constant 6 : i32
    %c1_i32_23 = arith.constant 1 : i32
    %55 = arith.muli %c6_i32, %c1_i32_23 : i32
    %c0_i32_24 = arith.constant 0 : i32
    %56 = arith.addi %c0_i32_24, %55 : i32
    %57 = arith.addi %0, %56 : i32
    %58 = arith.index_cast %57 : i32 to index
    %59 = memref.load %arg1[%58] : memref<16xi32, #tpu.memory_space<smem>>
    %60 = arith.index_cast %59 : i32 to index
    %c0_25 = arith.constant 0 : index
    %61 = vector.load %arg2[%60, %c0_25] : memref<64x8xf32, #tpu.memory_space<vmem>>, vector<1x8xf32>
    %62 = arith.index_cast %56 : i32 to index
    %c0_26 = arith.constant 0 : index
    %63 = vector.load %arg6[%62, %c0_26] : memref<16x8xf32, #tpu.memory_space<vmem>>, vector<1x8xf32>
    tpu.vector_store %arg6[%62, %c0_26], %61 {strides = array<i32>} : memref<16x8xf32, #tpu.memory_space<vmem>>, vector<1x8xf32>,
    %c7_i32 = arith.constant 7 : i32
    %c1_i32_27 = arith.constant 1 : i32
    %64 = arith.muli %c7_i32, %c1_i32_27 : i32
    %c0_i32_28 = arith.constant 0 : i32
    %65 = arith.addi %c0_i32_28, %64 : i32
    %66 = arith.addi %0, %65 : i32
    %67 = arith.index_cast %66 : i32 to index
    %68 = memref.load %arg1[%67] : memref<16xi32, #tpu.memory_space<smem>>
    %69 = arith.index_cast %68 : i32 to index
    %c0_29 = arith.constant 0 : index
    %70 = vector.load %arg2[%69, %c0_29] : memref<64x8xf32, #tpu.memory_space<vmem>>, vector<1x8xf32>
    %71 = arith.index_cast %65 : i32 to index
    %c0_30 = arith.constant 0 : index
    %72 = vector.load %arg6[%71, %c0_30] : memref<16x8xf32, #tpu.memory_space<vmem>>, vector<1x8xf32>
    tpu.vector_store %arg6[%71, %c0_30], %70 {strides = array<i32>} : memref<16x8xf32, #tpu.memory_space<vmem>>, vector<1x8xf32>,
    %c8_i32 = arith.constant 8 : i32
    %c1_i32_31 = arith.constant 1 : i32
    %73 = arith.muli %c8_i32, %c1_i32_31 : i32
    %c0_i32_32 = arith.constant 0 : i32
    %74 = arith.addi %c0_i32_32, %73 : i32
    %75 = arith.addi %0, %74 : i32
    %76 = arith.index_cast %75 : i32 to index
    %77 = memref.load %arg1[%76] : memref<16xi32, #tpu.memory_space<smem>>
    %78 = arith.index_cast %77 : i32 to index
    %c0_33 = arith.constant 0 : index
    %79 = vector.load %arg2[%78, %c0_33] : memref<64x8xf32, #tpu.memory_space<vmem>>, vector<1x8xf32>
    %80 = arith.index_cast %74 : i32 to index
    %c0_34 = arith.constant 0 : index
    %81 = vector.load %arg6[%80, %c0_34] : memref<16x8xf32, #tpu.memory_space<vmem>>, vector<1x8xf32>
    tpu.vector_store %arg6[%80, %c0_34], %79 {strides = array<i32>} : memref<16x8xf32, #tpu.memory_space<vmem>>, vector<1x8xf32>,
    %c9_i32 = arith.constant 9 : i32
    %c1_i32_35 = arith.constant 1 : i32
    %82 = arith.muli %c9_i32, %c1_i32_35 : i32
    %c0_i32_36 = arith.constant 0 : i32
    %83 = arith.addi %c0_i32_36, %82 : i32
    %84 = arith.addi %0, %83 : i32
    %85 = arith.index_cast %84 : i32 to index
    %86 = memref.load %arg1[%85] : memref<16xi32, #tpu.memory_space<smem>>
    %87 = arith.index_cast %86 : i32 to index
    %c0_37 = arith.constant 0 : index
    %88 = vector.load %arg2[%87, %c0_37] : memref<64x8xf32, #tpu.memory_space<vmem>>, vector<1x8xf32>
    %89 = arith.index_cast %83 : i32 to index
    %c0_38 = arith.constant 0 : index
    %90 = vector.load %arg6[%89, %c0_38] : memref<16x8xf32, #tpu.memory_space<vmem>>, vector<1x8xf32>
    tpu.vector_store %arg6[%89, %c0_38], %88 {strides = array<i32>} : memref<16x8xf32, #tpu.memory_space<vmem>>, vector<1x8xf32>,
    %c10_i32 = arith.constant 10 : i32
    %c1_i32_39 = arith.constant 1 : i32
    %91 = arith.muli %c10_i32, %c1_i32_39 : i32
    %c0_i32_40 = arith.constant 0 : i32
    %92 = arith.addi %c0_i32_40, %91 : i32
    %93 = arith.addi %0, %92 : i32
    %94 = arith.index_cast %93 : i32 to index
    %95 = memref.load %arg1[%94] : memref<16xi32, #tpu.memory_space<smem>>
    %96 = arith.index_cast %95 : i32 to index
    %c0_41 = arith.constant 0 : index
    %97 = vector.load %arg2[%96, %c0_41] : memref<64x8xf32, #tpu.memory_space<vmem>>, vector<1x8xf32>
    %98 = arith.index_cast %92 : i32 to index
    %c0_42 = arith.constant 0 : index
    %99 = vector.load %arg6[%98, %c0_42] : memref<16x8xf32, #tpu.memory_space<vmem>>, vector<1x8xf32>
    tpu.vector_store %arg6[%98, %c0_42], %97 {strides = array<i32>} : memref<16x8xf32, #tpu.memory_space<vmem>>, vector<1x8xf32>,
    %c11_i32 = arith.constant 11 : i32
    %c1_i32_43 = arith.constant 1 : i32
    %100 = arith.muli %c11_i32, %c1_i32_43 : i32
    %c0_i32_44 = arith.constant 0 : i32
    %101 = arith.addi %c0_i32_44, %100 : i32
    %102 = arith.addi %0, %101 : i32
    %103 = arith.index_cast %102 : i32 to index
    %104 = memref.load %arg1[%103] : memref<16xi32, #tpu.memory_space<smem>>
    %105 = arith.index_cast %104 : i32 to index
    %c0_45 = arith.constant 0 : index
    %106 = vector.load %arg2[%105, %c0_45] : memref<64x8xf32, #tpu.memory_space<vmem>>, vector<1x8xf32>
    %107 = arith.index_cast %101 : i32 to index
    %c0_46 = arith.constant 0 : index
    %108 = vector.load %arg6[%107, %c0_46] : memref<16x8xf32, #tpu.memory_space<vmem>>, vector<1x8xf32>
    tpu.vector_store %arg6[%107, %c0_46], %106 {strides = array<i32>} : memref<16x8xf32, #tpu.memory_space<vmem>>, vector<1x8xf32>,
    %c12_i32 = arith.constant 12 : i32
    %c1_i32_47 = arith.constant 1 : i32
    %109 = arith.muli %c12_i32, %c1_i32_47 : i32
    %c0_i32_48 = arith.constant 0 : i32
    %110 = arith.addi %c0_i32_48, %109 : i32
    %111 = arith.addi %0, %110 : i32
    %112 = arith.index_cast %111 : i32 to index
    %113 = memref.load %arg1[%112] : memref<16xi32, #tpu.memory_space<smem>>
    %114 = arith.index_cast %113 : i32 to index
    %c0_49 = arith.constant 0 : index
    %115 = vector.load %arg2[%114, %c0_49] : memref<64x8xf32, #tpu.memory_space<vmem>>, vector<1x8xf32>
    %116 = arith.index_cast %110 : i32 to index
    %c0_50 = arith.constant 0 : index
    %117 = vector.load %arg6[%116, %c0_50] : memref<16x8xf32, #tpu.memory_space<vmem>>, vector<1x8xf32>
    tpu.vector_store %arg6[%116, %c0_50], %115 {strides = array<i32>} : memref<16x8xf32, #tpu.memory_space<vmem>>, vector<1x8xf32>,
    %c13_i32 = arith.constant 13 : i32
    %c1_i32_51 = arith.constant 1 : i32
    %118 = arith.muli %c13_i32, %c1_i32_51 : i32
    %c0_i32_52 = arith.constant 0 : i32
    %119 = arith.addi %c0_i32_52, %118 : i32
    %120 = arith.addi %0, %119 : i32
    %121 = arith.index_cast %120 : i32 to index
    %122 = memref.load %arg1[%121] : memref<16xi32, #tpu.memory_space<smem>>
    %123 = arith.index_cast %122 : i32 to index
    %c0_53 = arith.constant 0 : index
    %124 = vector.load %arg2[%123, %c0_53] : memref<64x8xf32, #tpu.memory_space<vmem>>, vector<1x8xf32>
    %125 = arith.index_cast %119 : i32 to index
    %c0_54 = arith.constant 0 : index
    %126 = vector.load %arg6[%125, %c0_54] : memref<16x8xf32, #tpu.memory_space<vmem>>, vector<1x8xf32>
    tpu.vector_store %arg6[%125, %c0_54], %124 {strides = array<i32>} : memref<16x8xf32, #tpu.memory_space<vmem>>, vector<1x8xf32>,
    %c14_i32 = arith.constant 14 : i32
    %c1_i32_55 = arith.constant 1 : i32
    %127 = arith.muli %c14_i32, %c1_i32_55 : i32
    %c0_i32_56 = arith.constant 0 : i32
    %128 = arith.addi %c0_i32_56, %127 : i32
    %129 = arith.addi %0, %128 : i32
    %130 = arith.index_cast %129 : i32 to index
    %131 = memref.load %arg1[%130] : memref<16xi32, #tpu.memory_space<smem>>
    %132 = arith.index_cast %131 : i32 to index
    %c0_57 = arith.constant 0 : index
    %133 = vector.load %arg2[%132, %c0_57] : memref<64x8xf32, #tpu.memory_space<vmem>>, vector<1x8xf32>
    %134 = arith.index_cast %128 : i32 to index
    %c0_58 = arith.constant 0 : index
    %135 = vector.load %arg6[%134, %c0_58] : memref<16x8xf32, #tpu.memory_space<vmem>>, vector<1x8xf32>
    tpu.vector_store %arg6[%134, %c0_58], %133 {strides = array<i32>} : memref<16x8xf32, #tpu.memory_space<vmem>>, vector<1x8xf32>,
    %c15_i32 = arith.constant 15 : i32
    %c1_i32_59 = arith.constant 1 : i32
    %136 = arith.muli %c15_i32, %c1_i32_59 : i32
    %c0_i32_60 = arith.constant 0 : i32
    %137 = arith.addi %c0_i32_60, %136 : i32
    %138 = arith.addi %0, %137 : i32
    %139 = arith.index_cast %138 : i32 to index
    %140 = memref.load %arg1[%139] : memref<16xi32, #tpu.memory_space<smem>>
    %141 = arith.index_cast %140 : i32 to index
    %c0_61 = arith.constant 0 : index
    %142 = vector.load %arg2[%141, %c0_61] : memref<64x8xf32, #tpu.memory_space<vmem>>, vector<1x8xf32>
    %143 = arith.index_cast %137 : i32 to index
    %c0_62 = arith.constant 0 : index
    %144 = vector.load %arg6[%143, %c0_62] : memref<16x8xf32, #tpu.memory_space<vmem>>, vector<1x8xf32>
    tpu.vector_store %arg6[%143, %c0_62], %142 {strides = array<i32>} : memref<16x8xf32, #tpu.memory_space<vmem>>, vector<1x8xf32>,
    %c16_i32_63 = arith.constant 16 : i32
    %c0_64 = arith.constant 0 : index
    %c0_65 = arith.constant 0 : index
    %145 = vector.load %arg6[%c0_64, %c0_65] : memref<16x8xf32, #tpu.memory_space<vmem>>, vector<16x8xf32>
    %146 = arith.truncf %145 : vector<16x8xf32> to vector<16x8xbf16>
    %c0_66 = arith.constant 0 : index
    %c0_67 = arith.constant 0 : index
    %147 = vector.load %arg3[%c0_66, %c0_67] : memref<8x128xbf16, #tpu.memory_space<vmem>>, vector<8x128xbf16>
    %cst = arith.constant dense<0.000000e+00> : vector<16x128xf32>
    %148 = tpu.matmul %146, %147, %cst {dimension_numbers = #tpu.dot_dimension_numbers<[1], [0], [0], [1], [0, 0, 1, 1], [], []>} : vector<16x8xbf16>, vector<8x128xbf16>, vector<16x128xf32> -> vector<16x128xf32>
    %c0_68 = arith.constant 0 : index
    %c0_69 = arith.constant 0 : index
    %149 = memref.load %arg4[%c0_68, %c0_69] : memref<1x1xf32, #tpu.memory_space<smem>>
    %150 = vector.broadcast %149 : f32 to vector<16x128xf32>
    %151 = arith.mulf %148, %150 : vector<16x128xf32>
    %c0_70 = arith.constant 0 : index
    %c0_71 = arith.constant 0 : index
    %152 = vector.load %arg5[%c0_70, %c0_71] : memref<16x128xf32, #tpu.memory_space<vmem>>, vector<16x128xf32>
    tpu.vector_store %arg5[%c0_70, %c0_71], %151 {strides = array<i32>} : memref<16x128xf32, #tpu.memory_space<vmem>>, vector<16x128xf32>,
    return
  }
  func.func @transform_0(%arg0: i32, %arg1: memref<16xi32, #tpu.memory_space<smem>>) -> (i32, i32) {
    %c0_i32 = arith.constant 0 : i32
    %c0_i32_0 = arith.constant 0 : i32
    %c0_i32_1 = arith.constant 0 : i32
    return %c0_i32, %c0_i32_0 : i32, i32
  }
  func.func @transform_1(%arg0: i32, %arg1: memref<16xi32, #tpu.memory_space<smem>>) -> (i32, i32) {
    %c0_i32 = arith.constant 0 : i32
    %c0_i32_0 = arith.constant 0 : i32
    %c0_i32_1 = arith.constant 0 : i32
    return %c0_i32, %c0_i32_0 : i32, i32
  }
  func.func @transform_2(%arg0: i32, %arg1: memref<16xi32, #tpu.memory_space<smem>>) -> (i32, i32) {
    %c0_i32 = arith.constant 0 : i32
    %c0_i32_0 = arith.constant 0 : i32
    %c0_i32_1 = arith.constant 0 : i32
    return %c0_i32, %c0_i32_0 : i32, i32
  }
  func.func @transform_3(%arg0: i32, %arg1: memref<16xi32, #tpu.memory_space<smem>>) -> (i32, i32) {
    %c0_i32 = arith.constant 0 : i32
    %c0_i32_0 = arith.constant 0 : i32
    return %arg0, %c0_i32 : i32, i32
  }
}

module attributes {stable_mosaic.version = 11 : i64} {
  func.func @_adapter_kernel(%arg0: i32, %arg1: memref<16xi32, #tpu.memory_space<smem>>, %arg2: memref<64x8xf32, #tpu.memory_space<vmem>>, %arg3: memref<8x128xbf16, #tpu.memory_space<vmem>>, %arg4: memref<1x1xf32, #tpu.memory_space<smem>>, %arg5: memref<16x128xf32, #tpu.memory_space<vmem>>, %arg6: memref<16x8xf32, #tpu.memory_space<vmem>>) attributes {dimension_semantics = [#tpu.dimension_semantics<parallel>], iteration_bounds = array<i64: 1>, scalar_prefetch = 1 : i64, scratch_operands = 1 : i64, tpu.core_type = #tpu.core_type<tc>, window_params = [{pipeline_mode = #tpu.pipeline_mode<synchronous>, transform_indices = @transform_0, window_bounds = array<i64: 64, 8>}, {pipeline_mode = #tpu.pipeline_mode<synchronous>, transform_indices = @transform_1, window_bounds = array<i64: 8, 128>}, {transform_indices = @transform_2, window_bounds = array<i64: 1, 1>}, {transform_indices = @transform_3, window_bounds = array<i64: 16, 128>}]} {
    %c16_i32 = arith.constant 16 : i32
    %0 = arith.muli %arg0, %c16_i32 : i32
    %c0_i32 = arith.constant 0 : i32
    %c1_i32 = arith.constant 1 : i32
    %1 = arith.muli %c0_i32, %c1_i32 : i32
    %c0_i32_0 = arith.constant 0 : i32
    %2 = arith.addi %c0_i32_0, %1 : i32
    %3 = arith.addi %0, %2 : i32
    %4 = arith.index_cast %3 : i32 to index
    %5 = memref.load %arg1[%4] : memref<16xi32, #tpu.memory_space<smem>>
    %6 = arith.index_cast %5 : i32 to index
    %c0 = arith.constant 0 : index
    %7 = vector.load %arg2[%6, %c0] : memref<64x8xf32, #tpu.memory_space<vmem>>, vector<1x8xf32>
    %8 = arith.index_cast %2 : i32 to index
    %c0_1 = arith.constant 0 : index
    %9 = vector.load %arg6[%8, %c0_1] : memref<16x8xf32, #tpu.memory_space<vmem>>, vector<1x8xf32>
    tpu.vector_store %arg6[%8, %c0_1], %7 {strides = array<i32>} : memref<16x8xf32, #tpu.memory_space<vmem>>, vector<1x8xf32>,
    %c1_i32_2 = arith.constant 1 : i32
    %c1_i32_3 = arith.constant 1 : i32
    %10 = arith.muli %c1_i32_2, %c1_i32_3 : i32
    %c0_i32_4 = arith.constant 0 : i32
    %11 = arith.addi %c0_i32_4, %10 : i32
    %12 = arith.addi %0, %11 : i32
    %13 = arith.index_cast %12 : i32 to index
    %14 = memref.load %arg1[%13] : memref<16xi32, #tpu.memory_space<smem>>
    %15 = arith.index_cast %14 : i32 to index
    %c0_5 = arith.constant 0 : index
    %16 = vector.load %arg2[%15, %c0_5] : memref<64x8xf32, #tpu.memory_space<vmem>>, vector<1x8xf32>
    %17 = arith.index_cast %11 : i32 to index
    %c0_6 = arith.constant 0 : index
    %18 = vector.load %arg6[%17, %c0_6] : memref<16x8xf32, #tpu.memory_space<vmem>>, vector<1x8xf32>
    tpu.vector_store %arg6[%17, %c0_6], %16 {strides = array<i32>} : memref<16x8xf32, #tpu.memory_space<vmem>>, vector<1x8xf32>,
    %c2_i32 = arith.constant 2 : i32
    %c1_i32_7 = arith.constant 1 : i32
    %19 = arith.muli %c2_i32, %c1_i32_7 : i32
    %c0_i32_8 = arith.constant 0 : i32
    %20 = arith.addi %c0_i32_8, %19 : i32
    %21 = arith.addi %0, %20 : i32
    %22 = arith.index_cast %21 : i32 to index
    %23 = memref.load %arg1[%22] : memref<16xi32, #tpu.memory_space<smem>>
    %24 = arith.index_cast %23 : i32 to index
    %c0_9 = arith.constant 0 : index
    %25 = vector.load %arg2[%24, %c0_9] : memref<64x8xf32, #tpu.memory_space<vmem>>, vector<1x8xf32>
    %26 = arith.index_cast %20 : i32 to index
    %c0_10 = arith.constant 0 : index
    %27 = vector.load %arg6[%26, %c0_10] : memref<16x8xf32, #tpu.memory_space<vmem>>, vector<1x8xf32>
    tpu.vector_store %arg6[%26, %c0_10], %25 {strides = array<i32>} : memref<16x8xf32, #tpu.memory_space<vmem>>, vector<1x8xf32>,
    %c3_i32 = arith.constant 3 : i32
    %c1_i32_11 = arith.constant 1 : i32
    %28 = arith.muli %c3_i32, %c1_i32_11 : i32
    %c0_i32_12 = arith.constant 0 : i32
    %29 = arith.addi %c0_i32_12, %28 : i32
    %30 = arith.addi %0, %29 : i32
    %31 = arith.index_cast %30 : i32 to index
    %32 = memref.load %arg1[%31] : memref<16xi32, #tpu.memory_space<smem>>
    %33 = arith.index_cast %32 : i32 to index
    %c0_13 = arith.constant 0 : index
    %34 = vector.load %arg2[%33, %c0_13] : memref<64x8xf32, #tpu.memory_space<vmem>>, vector<1x8xf32>
    %35 = arith.index_cast %29 : i32 to index
    %c0_14 = arith.constant 0 : index
    %36 = vector.load %arg6[%35, %c0_14] : memref<16x8xf32, #tpu.memory_space<vmem>>, vector<1x8xf32>
    tpu.vector_store %arg6[%35, %c0_14], %34 {strides = array<i32>} : memref<16x8xf32, #tpu.memory_space<vmem>>, vector<1x8xf32>,
    %c4_i32 = arith.constant 4 : i32
    %c1_i32_15 = arith.constant 1 : i32
    %37 = arith.muli %c4_i32, %c1_i32_15 : i32
    %c0_i32_16 = arith.constant 0 : i32
    %38 = arith.addi %c0_i32_16, %37 : i32
    %39 = arith.addi %0, %38 : i32
    %40 = arith.index_cast %39 : i32 to index
    %41 = memref.load %arg1[%40] : memref<16xi32, #tpu.memory_space<smem>>
    %42 = arith.index_cast %41 : i32 to index
    %c0_17 = arith.constant 0 : index
    %43 = vector.load %arg2[%42, %c0_17] : memref<64x8xf32, #tpu.memory_space<vmem>>, vector<1x8xf32>
    %44 = arith.index_cast %38 : i32 to index
    %c0_18 = arith.constant 0 : index
    %45 = vector.load %arg6[%44, %c0_18] : memref<16x8xf32, #tpu.memory_space<vmem>>, vector<1x8xf32>
    tpu.vector_store %arg6[%44, %c0_18], %43 {strides = array<i32>} : memref<16x8xf32, #tpu.memory_space<vmem>>, vector<1x8xf32>,
    %c5_i32 = arith.constant 5 : i32
    %c1_i32_19 = arith.constant 1 : i32
    %46 = arith.muli %c5_i32, %c1_i32_19 : i32
    %c0_i32_20 = arith.constant 0 : i32
    %47 = arith.addi %c0_i32_20, %46 : i32
    %48 = arith.addi %0, %47 : i32
    %49 = arith.index_cast %48 : i32 to index
    %50 = memref.load %arg1[%49] : memref<16xi32, #tpu.memory_space<smem>>
    %51 = arith.index_cast %50 : i32 to index
    %c0_21 = arith.constant 0 : index
    %52 = vector.load %arg2[%51, %c0_21] : memref<64x8xf32, #tpu.memory_space<vmem>>, vector<1x8xf32>
    %53 = arith.index_cast %47 : i32 to index
    %c0_22 = arith.constant 0 : index
    %54 = vector.load %arg6[%53, %c0_22] : memref<16x8xf32, #tpu.memory_space<vmem>>, vector<1x8xf32>
    tpu.vector_store %arg6[%53, %c0_22], %52 {strides = array<i32>} : memref<16x8xf32, #tpu.memory_space<vmem>>, vector<1x8xf32>,
    %c6_i32 = arith.constant 6 : i32
    %c1_i32_23 = arith.constant 1 : i32
    %55 = arith.muli %c6_i32, %c1_i32_23 : i32
    %c0_i32_24 = arith.constant 0 : i32
    %56 = arith.addi %c0_i32_24, %55 : i32
    %57 = arith.addi %0, %56 : i32
    %58 = arith.index_cast %57 : i32 to index
    %59 = memref.load %arg1[%58] : memref<16xi32, #tpu.memory_space<smem>>
    %60 = arith.index_cast %59 : i32 to index
    %c0_25 = arith.constant 0 : index
    %61 = vector.load %arg2[%60, %c0_25] : memref<64x8xf32, #tpu.memory_space<vmem>>, vector<1x8xf32>
    %62 = arith.index_cast %56 : i32 to index
    %c0_26 = arith.constant 0 : index
    %63 = vector.load %arg6[%62, %c0_26] : memref<16x8xf32, #tpu.memory_space<vmem>>, vector<1x8xf32>
    tpu.vector_store %arg6[%62, %c0_26], %61 {strides = array<i32>} : memref<16x8xf32, #tpu.memory_space<vmem>>, vector<1x8xf32>,
    %c7_i32 = arith.constant 7 : i32
    %c1_i32_27 = arith.constant 1 : i32
    %64 = arith.muli %c7_i32, %c1_i32_27 : i32
    %c0_i32_28 = arith.constant 0 : i32
    %65 = arith.addi %c0_i32_28, %64 : i32
    %66 = arith.addi %0, %65 : i32
    %67 = arith.index_cast %66 : i32 to index
    %68 = memref.load %arg1[%67] : memref<16xi32, #tpu.memory_space<smem>>
    %69 = arith.index_cast %68 : i32 to index
    %c0_29 = arith.constant 0 : index
    %70 = vector.load %arg2[%69, %c0_29] : memref<64x8xf32, #tpu.memory_space<vmem>>, vector<1x8xf32>
    %71 = arith.index_cast %65 : i32 to index
    %c0_30 = arith.constant 0 : index
    %72 = vector.load %arg6[%71, %c0_30] : memref<16x8xf32, #tpu.memory_space<vmem>>, vector<1x8xf32>
    tpu.vector_store %arg6[%71, %c0_30], %70 {strides = array<i32>} : memref<16x8xf32, #tpu.memory_space<vmem>>, vector<1x8xf32>,
    %c8_i32 = arith.constant 8 : i32
    %c1_i32_31 = arith.constant 1 : i32
    %73 = arith.muli %c8_i32, %c1_i32_31 : i32
    %c0_i32_32 = arith.constant 0 : i32
    %74 = arith.addi %c0_i32_32, %73 : i32
    %75 = arith.addi %0, %74 : i32
    %76 = arith.index_cast %75 : i32 to index
    %77 = memref.load %arg1[%76] : memref<16xi32, #tpu.memory_space<smem>>
    %78 = arith.index_cast %77 : i32 to index
    %c0_33 = arith.constant 0 : index
    %79 = vector.load %arg2[%78, %c0_33] : memref<64x8xf32, #tpu.memory_space<vmem>>, vector<1x8xf32>
    %80 = arith.index_cast %74 : i32 to index
    %c0_34 = arith.constant 0 : index
    %81 = vector.load %arg6[%80, %c0_34] : memref<16x8xf32, #tpu.memory_space<vmem>>, vector<1x8xf32>
    tpu.vector_store %arg6[%80, %c0_34], %79 {strides = array<i32>} : memref<16x8xf32, #tpu.memory_space<vmem>>, vector<1x8xf32>,
    %c9_i32 = arith.constant 9 : i32
    %c1_i32_35 = arith.constant 1 : i32
    %82 = arith.muli %c9_i32, %c1_i32_35 : i32
    %c0_i32_36 = arith.constant 0 : i32
    %83 = arith.addi %c0_i32_36, %82 : i32
    %84 = arith.addi %0, %83 : i32
    %85 = arith.index_cast %84 : i32 to index
    %86 = memref.load %arg1[%85] : memref<16xi32, #tpu.memory_space<smem>>
    %87 = arith.index_cast %86 : i32 to index
    %c0_37 = arith.constant 0 : index
    %88 = vector.load %arg2[%87, %c0_37] : memref<64x8xf32, #tpu.memory_space<vmem>>, vector<1x8xf32>
    %89 = arith.index_cast %83 : i32 to index
    %c0_38 = arith.constant 0 : index
    %90 = vector.load %arg6[%89, %c0_38] : memref<16x8xf32, #tpu.memory_space<vmem>>, vector<1x8xf32>
    tpu.vector_store %arg6[%89, %c0_38], %88 {strides = array<i32>} : memref<16x8xf32, #tpu.memory_space<vmem>>, vector<1x8xf32>,
    %c10_i32 = arith.constant 10 : i32
    %c1_i32_39 = arith.constant 1 : i32
    %91 = arith.muli %c10_i32, %c1_i32_39 : i32
    %c0_i32_40 = arith.constant 0 : i32
    %92 = arith.addi %c0_i32_40, %91 : i32
    %93 = arith.addi %0, %92 : i32
    %94 = arith.index_cast %93 : i32 to index
    %95 = memref.load %arg1[%94] : memref<16xi32, #tpu.memory_space<smem>>
    %96 = arith.index_cast %95 : i32 to index
    %c0_41 = arith.constant 0 : index
    %97 = vector.load %arg2[%96, %c0_41] : memref<64x8xf32, #tpu.memory_space<vmem>>, vector<1x8xf32>
    %98 = arith.index_cast %92 : i32 to index
    %c0_42 = arith.constant 0 : index
    %99 = vector.load %arg6[%98, %c0_42] : memref<16x8xf32, #tpu.memory_space<vmem>>, vector<1x8xf32>
    tpu.vector_store %arg6[%98, %c0_42], %97 {strides = array<i32>} : memref<16x8xf32, #tpu.memory_space<vmem>>, vector<1x8xf32>,
    %c11_i32 = arith.constant 11 : i32
    %c1_i32_43 = arith.constant 1 : i32
    %100 = arith.muli %c11_i32, %c1_i32_43 : i32
    %c0_i32_44 = arith.constant 0 : i32
    %101 = arith.addi %c0_i32_44, %100 : i32
    %102 = arith.addi %0, %101 : i32
    %103 = arith.index_cast %102 : i32 to index
    %104 = memref.load %arg1[%103] : memref<16xi32, #tpu.memory_space<smem>>
    %105 = arith.index_cast %104 : i32 to index
    %c0_45 = arith.constant 0 : index
    %106 = vector.load %arg2[%105, %c0_45] : memref<64x8xf32, #tpu.memory_space<vmem>>, vector<1x8xf32>
    %107 = arith.index_cast %101 : i32 to index
    %c0_46 = arith.constant 0 : index
    %108 = vector.load %arg6[%107, %c0_46] : memref<16x8xf32, #tpu.memory_space<vmem>>, vector<1x8xf32>
    tpu.vector_store %arg6[%107, %c0_46], %106 {strides = array<i32>} : memref<16x8xf32, #tpu.memory_space<vmem>>, vector<1x8xf32>,
    %c12_i32 = arith.constant 12 : i32
    %c1_i32_47 = arith.constant 1 : i32
    %109 = arith.muli %c12_i32, %c1_i32_47 : i32
    %c0_i32_48 = arith.constant 0 : i32
    %110 = arith.addi %c0_i32_48, %109 : i32
    %111 = arith.addi %0, %110 : i32
    %112 = arith.index_cast %111 : i32 to index
    %113 = memref.load %arg1[%112] : memref<16xi32, #tpu.memory_space<smem>>
    %114 = arith.index_cast %113 : i32 to index
    %c0_49 = arith.constant 0 : index
    %115 = vector.load %arg2[%114, %c0_49] : memref<64x8xf32, #tpu.memory_space<vmem>>, vector<1x8xf32>
    %116 = arith.index_cast %110 : i32 to index
    %c0_50 = arith.constant 0 : index
    %117 = vector.load %arg6[%116, %c0_50] : memref<16x8xf32, #tpu.memory_space<vmem>>, vector<1x8xf32>
    tpu.vector_store %arg6[%116, %c0_50], %115 {strides = array<i32>} : memref<16x8xf32, #tpu.memory_space<vmem>>, vector<1x8xf32>,
    %c13_i32 = arith.constant 13 : i32
    %c1_i32_51 = arith.constant 1 : i32
    %118 = arith.muli %c13_i32, %c1_i32_51 : i32
    %c0_i32_52 = arith.constant 0 : i32
    %119 = arith.addi %c0_i32_52, %118 : i32
    %120 = arith.addi %0, %119 : i32
    %121 = arith.index_cast %120 : i32 to index
    %122 = memref.load %arg1[%121] : memref<16xi32, #tpu.memory_space<smem>>
    %123 = arith.index_cast %122 : i32 to index
    %c0_53 = arith.constant 0 : index
    %124 = vector.load %arg2[%123, %c0_53] : memref<64x8xf32, #tpu.memory_space<vmem>>, vector<1x8xf32>
    %125 = arith.index_cast %119 : i32 to index
    %c0_54 = arith.constant 0 : index
    %126 = vector.load %arg6[%125, %c0_54] : memref<16x8xf32, #tpu.memory_space<vmem>>, vector<1x8xf32>
    tpu.vector_store %arg6[%125, %c0_54], %124 {strides = array<i32>} : memref<16x8xf32, #tpu.memory_space<vmem>>, vector<1x8xf32>,
    %c14_i32 = arith.constant 14 : i32
    %c1_i32_55 = arith.constant 1 : i32
    %127 = arith.muli %c14_i32, %c1_i32_55 : i32
    %c0_i32_56 = arith.constant 0 : i32
    %128 = arith.addi %c0_i32_56, %127 : i32
    %129 = arith.addi %0, %128 : i32
    %130 = arith.index_cast %129 : i32 to index
    %131 = memref.load %arg1[%130] : memref<16xi32, #tpu.memory_space<smem>>
    %132 = arith.index_cast %131 : i32 to index
    %c0_57 = arith.constant 0 : index
    %133 = vector.load %arg2[%132, %c0_57] : memref<64x8xf32, #tpu.memory_space<vmem>>, vector<1x8xf32>
    %134 = arith.index_cast %128 : i32 to index
    %c0_58 = arith.constant 0 : index
    %135 = vector.load %arg6[%134, %c0_58] : memref<16x8xf32, #tpu.memory_space<vmem>>, vector<1x8xf32>
    tpu.vector_store %arg6[%134, %c0_58], %133 {strides = array<i32>} : memref<16x8xf32, #tpu.memory_space<vmem>>, vector<1x8xf32>,
    %c15_i32 = arith.constant 15 : i32
    %c1_i32_59 = arith.constant 1 : i32
    %136 = arith.muli %c15_i32, %c1_i32_59 : i32
    %c0_i32_60 = arith.constant 0 : i32
    %137 = arith.addi %c0_i32_60, %136 : i32
    %138 = arith.addi %0, %137 : i32
    %139 = arith.index_cast %138 : i32 to index
    %140 = memref.load %arg1[%139] : memref<16xi32, #tpu.memory_space<smem>>
    %141 = arith.index_cast %140 : i32 to index
    %c0_61 = arith.constant 0 : index
    %142 = vector.load %arg2[%141, %c0_61] : memref<64x8xf32, #tpu.memory_space<vmem>>, vector<1x8xf32>
    %143 = arith.index_cast %137 : i32 to index
    %c0_62 = arith.constant 0 : index
    %144 = vector.load %arg6[%143, %c0_62] : memref<16x8xf32, #tpu.memory_space<vmem>>, vector<1x8xf32>
    tpu.vector_store %arg6[%143, %c0_62], %142 {strides = array<i32>} : memref<16x8xf32, #tpu.memory_space<vmem>>, vector<1x8xf32>,
    %c16_i32_63 = arith.constant 16 : i32
    %c0_64 = arith.constant 0 : index
    %c0_65 = arith.constant 0 : index
    %145 = vector.load %arg6[%c0_64, %c0_65] : memref<16x8xf32, #tpu.memory_space<vmem>>, vector<16x8xf32>
    %146 = arith.truncf %145 : vector<16x8xf32> to vector<16x8xbf16>
    %c0_66 = arith.constant 0 : index
    %c0_67 = arith.constant 0 : index
    %147 = vector.load %arg3[%c0_66, %c0_67] : memref<8x128xbf16, #tpu.memory_space<vmem>>, vector<8x128xbf16>
    %cst = arith.constant dense<0.000000e+00> : vector<16x128xf32>
    %148 = tpu.matmul %146, %147, %cst {dimension_numbers = #tpu.dot_dimension_numbers<[1], [0], [0], [1], [0, 0, 1, 1], [], []>} : vector<16x8xbf16>, vector<8x128xbf16>, vector<16x128xf32> -> vector<16x128xf32>
    %c0_68 = arith.constant 0 : index
    %c0_69 = arith.constant 0 : index
    %149 = memref.load %arg4[%c0_68, %c0_69] : memref<1x1xf32, #tpu.memory_space<smem>>
    %150 = vector.broadcast %149 : f32 to vector<16x128xf32>
    %151 = arith.mulf %148, %150 : vector<16x128xf32>
    %c0_70 = arith.constant 0 : index
    %c0_71 = arith.constant 0 : index
    %152 = vector.load %arg5[%c0_70, %c0_71] : memref<16x128xf32, #tpu.memory_space<vmem>>, vector<16x128xf32>
    tpu.vector_store %arg5[%c0_70, %c0_71], %151 {strides = array<i32>} : memref<16x128xf32, #tpu.memory_space<vmem>>, vector<16x128xf32>,
    return
  }
  func.func @transform_0(%arg0: i32, %arg1: memref<16xi32, #tpu.memory_space<smem>>) -> (i32, i32) {
    %c0_i32 = arith.constant 0 : i32
    %c0_i32_0 = arith.constant 0 : i32
    %c0_i32_1 = arith.constant 0 : i32
    return %c0_i32, %c0_i32_0 : i32, i32
  }
  func.func @transform_1(%arg0: i32, %arg1: memref<16xi32, #tpu.memory_space<smem>>) -> (i32, i32) {
    %c0_i32 = arith.constant 0 : i32
    %c0_i32_0 = arith.constant 0 : i32
    %c0_i32_1 = arith.constant 0 : i32
    return %c0_i32, %c0_i32_0 : i32, i32
  }
  func.func @transform_2(%arg0: i32, %arg1: memref<16xi32, #tpu.memory_space<smem>>) -> (i32, i32) {
    %c0_i32 = arith.constant 0 : i32
    %c0_i32_0 = arith.constant 0 : i32
    %c0_i32_1 = arith.constant 0 : i32
    return %c0_i32, %c0_i32_0 : i32, i32
  }
  func.func @transform_3(%arg0: i32, %arg1: memref<16xi32, #tpu.memory_space<smem>>) -> (i32, i32) {
    %c0_i32 = arith.constant 0 : i32
    %c0_i32_0 = arith.constant 0 : i32
    return %arg0, %c0_i32 : i32, i32
  }
}

</mosaic_0001>

<llo_original>
// kernel: tpu_custom_call.1
$region0: #{tpu_custom_call.1}
  #allocation0 [shape = 'u32[]', space=smem, size = 0x4, offset = 0x4, fixed_abs, tag = 'smem constant byte address 0x4 - core index']
  #allocation1 [shape = 'u32[144,128]{1,0:T(1,128)}', space=vmem, size = 0x12000, scoped, tag = 'internal scratch']
  #allocation2 [shape = 'f32[16,8]{1,0:T(8,128)}', space=vmem, size = 0x2000, scoped, tag = 'scratch operand']
  #allocation3 [shape = 's32[1]{0}', space=sflag, size = 0x4, scoped, tag = 'scoped memory for tpu_custom_call.1']
  #allocation4 [shape = 'u8[512]{0}', space=smem, size = 0x200, scoped, tag = 'prefetched SMEM operand 0']
  #allocation5 [shape = 'f32[1,1]{1,0:T(1,128)S(6)}', space=smem, size = 0x200, scoped, tag = 'scoped memory for tpu_custom_call.1']
  %s0 = inlined_call_operand.vmem [shape: s32[16], index: 0, kind: input, shape index: {}]
  %s1 = inlined_call_operand.vmem [shape: f32[64,8], index: 1, kind: input, shape index: {}]
  %s2 = inlined_call_operand.vmem [shape: bf16[8,128], index: 2, kind: input, shape index: {}]
  %s3 = inlined_call_operand.<no memory space> [shape: f32[1,1], index: 3, kind: input, shape index: {}]
  %s4 = inlined_call_operand.hbm [shape: f32[16,128], index: 4, kind: output, shape index: {}]
  %s5 = sld [smem:[#allocation0]]
  $region22: #{tpu_custom_call.1} parent=0
    _
  %s7 = ssub.s32 1, %s5
  %s8 = scalar_select 0, %s7, %s5
  %s9 = sshll.u32 %s0, 4
  %s10 = int_to_ptr.vmem [resolvable:$true] %s9
  %12 = dma.vmem_to_smem %s10, 16, [#allocation4], [#allocation3]
  %13 = sst [smem:[#allocation5]] %s3
  %14 = dma.done [#allocation3], 16
  %15 = sfence
  $region1: #{tpu_custom_call.1} parent=0
    #allocation6 [shape = 'u8[8192]{0}', space=vmem, size = 0x2000, scoped, tag = 'output window, operand 0, single buffered']
    #allocation7 [shape = 's32[1]{0}', space=sflag, size = 0x4, scoped, tag = 'scoped memory for tpu_custom_call.1']
    %16 = vsyncpa [#allocation7], 0
    // Predicated region
    $region2: #{tpu_custom_call.1} parent=1 // pred_check
      _
    $region3: #{tpu_custom_call.1} parent=1 // pred_check_branch
      %18 = sbr.rel (0) target = $region5
    $region4: #{tpu_custom_call.1} parent=1 // pred_region
      _
    $region5: #{tpu_custom_call.1} parent=1 // pred_fallthru
      _
    // Predicated region
    $region6: #{tpu_custom_call.1} parent=1 // pred_check
      _
    $region7: #{tpu_custom_call.1} parent=1 // pred_check_branch
      %20 = sbr.rel (0) target = $region9
    $region8: #{tpu_custom_call.1} parent=1 // pred_region
      _
    $region9: #{tpu_custom_call.1} parent=1 // pred_fallthru
      _
    // Predicated region
    $region10: #{tpu_custom_call.1} parent=1 // pred_check
      _
    $region11: #{tpu_custom_call.1} parent=1 // pred_check_branch
      %22 = sbr.rel (0) target = $region13
    $region12: #{tpu_custom_call.1} parent=1 // pred_region
      _
    $region13: #{tpu_custom_call.1} parent=1 // pred_fallthru
      _
    %s24 = smul.u32 0, 16
    %s25 = sld [smem:[#allocation4 + %s24]]
    %s26 = scalar_lea.vmem %s1, %s25
    %v27 = vld [vmem:[%s26] sm:$0x1]
    %vm28 = vcmask 57344
    %29 = vst.msk [vmem:[#allocation2] sm:$0x1] %vm28, %v27
    %s30 = sadd.s32 %s24, 1
    %s31 = sld [smem:[#allocation4 + %s30]]
    %s32 = scalar_lea.vmem %s1, %s31
    %v33 = vld [vmem:[%s32] sm:$0x1]
    %34 = vst.msk [vmem:[#allocation2 + $0x1] sm:$0x1] %vm28, %v33
    %s35 = sadd.s32 %s24, 2
    %s36 = sld [smem:[#allocation4 + %s35]]
    %s37 = scalar_lea.vmem %s1, %s36
    %v38 = vld [vmem:[%s37] sm:$0x1]
    %39 = vst.msk [vmem:[#allocation2 + $0x2] sm:$0x1] %vm28, %v38
    %s40 = sadd.s32 %s24, 3
    %s41 = sld [smem:[#allocation4 + %s40]]
    %s42 = scalar_lea.vmem %s1, %s41
    %v43 = vld [vmem:[%s42] sm:$0x1]
    %44 = vst.msk [vmem:[#allocation2 + $0x3] sm:$0x1] %vm28, %v43
    %s45 = sadd.s32 %s24, 4
    %s46 = sld [smem:[#allocation4 + %s45]]
    %s47 = scalar_lea.vmem %s1, %s46
    %v48 = vld [vmem:[%s47] sm:$0x1]
    %49 = vst.msk [vmem:[#allocation2 + $0x4] sm:$0x1] %vm28, %v48
    %s50 = sadd.s32 %s24, 5
    %s51 = sld [smem:[#allocation4 + %s50]]
    %s52 = scalar_lea.vmem %s1, %s51
    %v53 = vld [vmem:[%s52] sm:$0x1]
    %54 = vst.msk [vmem:[#allocation2 + $0x5] sm:$0x1] %vm28, %v53
    %s55 = sadd.s32 %s24, 6
    %s56 = sld [smem:[#allocation4 + %s55]]
    %s57 = scalar_lea.vmem %s1, %s56
    %v58 = vld [vmem:[%s57] sm:$0x1]
    %59 = vst.msk [vmem:[#allocation2 + $0x6] sm:$0x1] %vm28, %v58
    %s60 = sadd.s32 %s24, 7
    %s61 = sld [smem:[#allocation4 + %s60]]
    %s62 = scalar_lea.vmem %s1, %s61
    %v63 = vld [vmem:[%s62] sm:$0x1]
    %64 = vst.msk [vmem:[#allocation2 + $0x7] sm:$0x1] %vm28, %v63
    %s65 = sadd.s32 %s24, 8
    %s66 = sld [smem:[#allocation4 + %s65]]
    %s67 = scalar_lea.vmem %s1, %s66
    %v68 = vld [vmem:[%s67] sm:$0x1]
    %69 = vst.msk [vmem:[#allocation2 + $0x8] sm:$0x1] %vm28, %v68
    %s70 = sadd.s32 %s24, 9
    %s71 = sld [smem:[#allocation4 + %s70]]
    %s72 = scalar_lea.vmem %s1, %s71
    %v73 = vld [vmem:[%s72] sm:$0x1]
    %74 = vst.msk [vmem:[#allocation2 + $0x9] sm:$0x1] %vm28, %v73
    %s75 = sadd.s32 %s24, 10
    %s76 = sld [smem:[#allocation4 + %s75]]
    %s77 = scalar_lea.vmem %s1, %s76
    %v78 = vld [vmem:[%s77] sm:$0x1]
    %79 = vst.msk [vmem:[#allocation2 + $0xa] sm:$0x1] %vm28, %v78
    %s80 = sadd.s32 %s24, 11
    %s81 = sld [smem:[#allocation4 + %s80]]
    %s82 = scalar_lea.vmem %s1, %s81
    %v83 = vld [vmem:[%s82] sm:$0x1]
    %84 = vst.msk [vmem:[#allocation2 + $0xb] sm:$0x1] %vm28, %v83
    %s85 = sadd.s32 %s24, 12
    %s86 = sld [smem:[#allocation4 + %s85]]
    %s87 = scalar_lea.vmem %s1, %s86
    %v88 = vld [vmem:[%s87] sm:$0x1]
    %89 = vst.msk [vmem:[#allocation2 + $0xc] sm:$0x1] %vm28, %v88
    %s90 = sadd.s32 %s24, 13
    %s91 = sld [smem:[#allocation4 + %s90]]
    %s92 = scalar_lea.vmem %s1, %s91
    %v93 = vld [vmem:[%s92] sm:$0x1]
    %94 = vst.msk [vmem:[#allocation2 + $0xd] sm:$0x1] %vm28, %v93
    %s95 = sadd.s32 %s24, 14
    %s96 = sld [smem:[#allocation4 + %s95]]
    %s97 = scalar_lea.vmem %s1, %s96
    %v98 = vld [vmem:[%s97] sm:$0x1]
    %99 = vst.msk [vmem:[#allocation2 + $0xe] sm:$0x1] %vm28, %v98
    %s100 = sadd.s32 %s24, 15
    %s101 = sld [smem:[#allocation4 + %s100]]
    %s102 = scalar_lea.vmem %s1, %s101
    %v103 = vld [vmem:[%s102] sm:$0x1]
    %104 = vst.msk [vmem:[#allocation2 + $0xf] sm:$0x1] %vm28, %v103
    %v105 = vld [vmem:[#allocation2] sm:$0xff]
    %v106 = vld [vmem:[#allocation2 + $0x8] sm:$0xff]
    %v107 = vpack.c.bf16 %v106, %v105
    %v108 = vld [vmem:[%s2] sm:$0xf]
    %vm109 = vcmask 64512
    %v111 = vsel %vm109, %v107, 0
    %vm113 = vcmask 1043456
    %v115 = vsel %vm113, %v108, 0
    %117 = vmatprep.subr.bf16.mxu0 0
    %118 = vmatpush1.bf16.msra.mxu0 %v115
    %119 = vmatprep.subr.bf16.mxu0 0
    %120 = vmatpush1.bf16.msra.mxu0 0
    %121 = vmatprep.subr.bf16.mxu0 0
    %122 = vmatpush1.bf16.msra.mxu0 0
    %123 = vmatprep.subr.bf16.mxu0 0
    %124 = vmatpush1.bf16.msra.mxu0 0
    %125 = vmatprep.subr.bf16.mxu0 0
    %126 = vmatpush1.bf16.msra.mxu0 0
    %127 = vmatprep.subr.bf16.mxu0 0
    %128 = vmatpush1.bf16.msra.mxu0 0
    %129 = vmatprep.subr.bf16.mxu0 0
    %130 = vmatpush1.bf16.msra.mxu0 0
    %131 = vmatprep.subr.bf16.mxu0 0
    %132 = vmatpush1.bf16.msra.mxu0 0
    %133 = vmatprep.subr.bf16.mxu0 0
    %134 = vmatpush1.bf16.msra.mxu0 0
    %135 = vmatprep.subr.bf16.mxu0 0
    %136 = vmatpush1.bf16.msra.mxu0 0
    %137 = vmatprep.subr.bf16.mxu0 0
    %138 = vmatpush1.bf16.msra.mxu0 0
    %139 = vmatprep.subr.bf16.mxu0 0
    %140 = vmatpush1.bf16.msra.mxu0 0
    %141 = vmatprep.subr.bf16.mxu0 0
    %142 = vmatpush1.bf16.msra.mxu0 0
    %143 = vmatprep.subr.bf16.mxu0 0
    %144 = vmatpush1.bf16.msra.mxu0 0
    %145 = vmatprep.subr.bf16.mxu0 0
    %146 = vmatpush1.bf16.msra.mxu0 0
    %147 = vmatprep.subr.bf16.mxu0 0
    %148 = vmatpush1.bf16.msra.mxu0 0
    %149 = vmatprep.mubr.bf16.mxu0 0
    %150 = vmatmul.mubr.bf16.gmra.mrb[0].mxu0 %v111
    %v151 = vpop.f32.mrb[0].mxu0
    %v152 = vadd.f32 0.0, %v151
    %v153 = vpop.f32.mrb[0].mxu0
    %v154 = vpop.f32.mrb[0].mxu0
    %v155 = vadd.f32 0.0, %v154
    %v156 = vpop.f32.mrb[0].mxu0
    %157 = vdwg.mxu0
    %s158 = sld [smem:[#allocation5]]
    %v159 = vstv %s158
    %v160 = vmul.f32 %v152, %v159
    %v161 = vmul.f32 %v155, %v159
    %162 = vst [vmem:[#allocation6] sm:$0xff] %v160
    %163 = vst [vmem:[#allocation6 + $0x8] sm:$0xff] %v161
    // Predicated region
    $region14: #{tpu_custom_call.1} parent=1 // pred_check
      _
    $region15: #{tpu_custom_call.1} parent=1 // pred_check_branch
      %165 = sbr.rel (0) target = $region17
    $region16: #{tpu_custom_call.1} parent=1 // pred_region
      %s167 = ssub.s32 256, 256
      %168 = vsyncadd [#allocation7], %s167
      %s169 = sshll.u32 [#allocation6], 4
      %s170 = int_to_ptr.vmem [resolvable:$true] %s169
      %175 = dma.vmem_to_hbm [thread:$0]  %s170, 256, %s4, [#allocation7], 128, 128, 8
    $region17: #{tpu_custom_call.1} parent=1 // pred_fallthru
      _
    // Predicated region
    $region18: #{tpu_custom_call.1} parent=1 // pred_check
      _
    $region19: #{tpu_custom_call.1} parent=1 // pred_check_branch
      %177 = sbr.rel (0) target = $region21
    $region20: #{tpu_custom_call.1} parent=1 // pred_region
      %178 = dma.done [#allocation7], 256
    $region21: #{tpu_custom_call.1} parent=1 // pred_fallthru
      _
    %179 = vsyncpa [#allocation7], 1

// kernel: tpu_custom_call.1
$region0: #{tpu_custom_call.1}
  #allocation0 [shape = 'u32[]', space=smem, size = 0x4, offset = 0x4, fixed_abs, tag = 'smem constant byte address 0x4 - core index']
  #allocation1 [shape = 'u32[144,128]{1,0:T(1,128)}', space=vmem, size = 0x12000, scoped, tag = 'internal scratch']
  #allocation2 [shape = 'f32[16,8]{1,0:T(8,128)}', space=vmem, size = 0x2000, scoped, tag = 'scratch operand']
  #allocation3 [shape = 's32[1]{0}', space=sflag, size = 0x4, scoped, tag = 'scoped memory for tpu_custom_call.1']
  #allocation4 [shape = 'u8[512]{0}', space=smem, size = 0x200, scoped, tag = 'prefetched SMEM operand 0']
  #allocation5 [shape = 'f32[1,1]{1,0:T(1,128)S(6)}', space=smem, size = 0x200, scoped, tag = 'scoped memory for tpu_custom_call.1']
  %s0 = inlined_call_operand.vmem [shape: s32[16], index: 0, kind: input, shape index: {}]
  %s1 = inlined_call_operand.vmem [shape: f32[64,8], index: 1, kind: input, shape index: {}]
  %s2 = inlined_call_operand.vmem [shape: bf16[8,128], index: 2, kind: input, shape index: {}]
  %s3 = inlined_call_operand.<no memory space> [shape: f32[1,1], index: 3, kind: input, shape index: {}]
  %s4 = inlined_call_operand.hbm [shape: f32[16,128], index: 4, kind: output, shape index: {}]
  %s5 = sld [smem:[#allocation0]]
  $region22: #{tpu_custom_call.1} parent=0
    _
  %s7 = ssub.s32 1, %s5
  %s8 = scalar_select 0, %s7, %s5
  %s9 = sshll.u32 %s0, 4
  %s10 = int_to_ptr.vmem [resolvable:$true] %s9
  %12 = dma.vmem_to_smem %s10, 16, [#allocation4], [#allocation3]
  %13 = sst [smem:[#allocation5]] %s3
  %14 = dma.done [#allocation3], 16
  %15 = sfence
  $region1: #{tpu_custom_call.1} parent=0
    #allocation6 [shape = 'u8[8192]{0}', space=vmem, size = 0x2000, scoped, tag = 'output window, operand 0, single buffered']
    #allocation7 [shape = 's32[1]{0}', space=sflag, size = 0x4, scoped, tag = 'scoped memory for tpu_custom_call.1']
    %16 = vsyncpa [#allocation7], 0
    // Predicated region
    $region2: #{tpu_custom_call.1} parent=1 // pred_check
      _
    $region3: #{tpu_custom_call.1} parent=1 // pred_check_branch
      %18 = sbr.rel (0) target = $region5
    $region4: #{tpu_custom_call.1} parent=1 // pred_region
      _
    $region5: #{tpu_custom_call.1} parent=1 // pred_fallthru
      _
    // Predicated region
    $region6: #{tpu_custom_call.1} parent=1 // pred_check
      _
    $region7: #{tpu_custom_call.1} parent=1 // pred_check_branch
      %20 = sbr.rel (0) target = $region9
    $region8: #{tpu_custom_call.1} parent=1 // pred_region
      _
    $region9: #{tpu_custom_call.1} parent=1 // pred_fallthru
      _
    // Predicated region
    $region10: #{tpu_custom_call.1} parent=1 // pred_check
      _
    $region11: #{tpu_custom_call.1} parent=1 // pred_check_branch
      %22 = sbr.rel (0) target = $region13
    $region12: #{tpu_custom_call.1} parent=1 // pred_region
      _
    $region13: #{tpu_custom_call.1} parent=1 // pred_fallthru
      _
    %s24 = smul.u32 0, 16
    %s25 = sld [smem:[#allocation4 + %s24]]
    %s26 = scalar_lea.vmem %s1, %s25
    %v27 = vld [vmem:[%s26] sm:$0x1]
    %vm28 = vcmask 57344
    %29 = vst.msk [vmem:[#allocation2] sm:$0x1] %vm28, %v27
    %s30 = sadd.s32 %s24, 1
    %s31 = sld [smem:[#allocation4 + %s30]]
    %s32 = scalar_lea.vmem %s1, %s31
    %v33 = vld [vmem:[%s32] sm:$0x1]
    %34 = vst.msk [vmem:[#allocation2 + $0x1] sm:$0x1] %vm28, %v33
    %s35 = sadd.s32 %s24, 2
    %s36 = sld [smem:[#allocation4 + %s35]]
    %s37 = scalar_lea.vmem %s1, %s36
    %v38 = vld [vmem:[%s37] sm:$0x1]
    %39 = vst.msk [vmem:[#allocation2 + $0x2] sm:$0x1] %vm28, %v38
    %s40 = sadd.s32 %s24, 3
    %s41 = sld [smem:[#allocation4 + %s40]]
    %s42 = scalar_lea.vmem %s1, %s41
    %v43 = vld [vmem:[%s42] sm:$0x1]
    %44 = vst.msk [vmem:[#allocation2 + $0x3] sm:$0x1] %vm28, %v43
    %s45 = sadd.s32 %s24, 4
    %s46 = sld [smem:[#allocation4 + %s45]]
    %s47 = scalar_lea.vmem %s1, %s46
    %v48 = vld [vmem:[%s47] sm:$0x1]
    %49 = vst.msk [vmem:[#allocation2 + $0x4] sm:$0x1] %vm28, %v48
    %s50 = sadd.s32 %s24, 5
    %s51 = sld [smem:[#allocation4 + %s50]]
    %s52 = scalar_lea.vmem %s1, %s51
    %v53 = vld [vmem:[%s52] sm:$0x1]
    %54 = vst.msk [vmem:[#allocation2 + $0x5] sm:$0x1] %vm28, %v53
    %s55 = sadd.s32 %s24, 6
    %s56 = sld [smem:[#allocation4 + %s55]]
    %s57 = scalar_lea.vmem %s1, %s56
    %v58 = vld [vmem:[%s57] sm:$0x1]
    %59 = vst.msk [vmem:[#allocation2 + $0x6] sm:$0x1] %vm28, %v58
    %s60 = sadd.s32 %s24, 7
    %s61 = sld [smem:[#allocation4 + %s60]]
    %s62 = scalar_lea.vmem %s1, %s61
    %v63 = vld [vmem:[%s62] sm:$0x1]
    %64 = vst.msk [vmem:[#allocation2 + $0x7] sm:$0x1] %vm28, %v63
    %s65 = sadd.s32 %s24, 8
    %s66 = sld [smem:[#allocation4 + %s65]]
    %s67 = scalar_lea.vmem %s1, %s66
    %v68 = vld [vmem:[%s67] sm:$0x1]
    %69 = vst.msk [vmem:[#allocation2 + $0x8] sm:$0x1] %vm28, %v68
    %s70 = sadd.s32 %s24, 9
    %s71 = sld [smem:[#allocation4 + %s70]]
    %s72 = scalar_lea.vmem %s1, %s71
    %v73 = vld [vmem:[%s72] sm:$0x1]
    %74 = vst.msk [vmem:[#allocation2 + $0x9] sm:$0x1] %vm28, %v73
    %s75 = sadd.s32 %s24, 10
    %s76 = sld [smem:[#allocation4 + %s75]]
    %s77 = scalar_lea.vmem %s1, %s76
    %v78 = vld [vmem:[%s77] sm:$0x1]
    %79 = vst.msk [vmem:[#allocation2 + $0xa] sm:$0x1] %vm28, %v78
    %s80 = sadd.s32 %s24, 11
    %s81 = sld [smem:[#allocation4 + %s80]]
    %s82 = scalar_lea.vmem %s1, %s81
    %v83 = vld [vmem:[%s82] sm:$0x1]
    %84 = vst.msk [vmem:[#allocation2 + $0xb] sm:$0x1] %vm28, %v83
    %s85 = sadd.s32 %s24, 12
    %s86 = sld [smem:[#allocation4 + %s85]]
    %s87 = scalar_lea.vmem %s1, %s86
    %v88 = vld [vmem:[%s87] sm:$0x1]
    %89 = vst.msk [vmem:[#allocation2 + $0xc] sm:$0x1] %vm28, %v88
    %s90 = sadd.s32 %s24, 13
    %s91 = sld [smem:[#allocation4 + %s90]]
    %s92 = scalar_lea.vmem %s1, %s91
    %v93 = vld [vmem:[%s92] sm:$0x1]
    %94 = vst.msk [vmem:[#allocation2 + $0xd] sm:$0x1] %vm28, %v93
    %s95 = sadd.s32 %s24, 14
    %s96 = sld [smem:[#allocation4 + %s95]]
    %s97 = scalar_lea.vmem %s1, %s96
    %v98 = vld [vmem:[%s97] sm:$0x1]
    %99 = vst.msk [vmem:[#allocation2 + $0xe] sm:$0x1] %vm28, %v98
    %s100 = sadd.s32 %s24, 15
    %s101 = sld [smem:[#allocation4 + %s100]]
    %s102 = scalar_lea.vmem %s1, %s101
    %v103 = vld [vmem:[%s102] sm:$0x1]
    %104 = vst.msk [vmem:[#allocation2 + $0xf] sm:$0x1] %vm28, %v103
    %v105 = vld [vmem:[#allocation2] sm:$0xff]
    %v106 = vld [vmem:[#allocation2 + $0x8] sm:$0xff]
    %v107 = vpack.c.bf16 %v106, %v105
    %v108 = vld [vmem:[%s2] sm:$0xf]
    %vm109 = vcmask 64512
    %v111 = vsel %vm109, %v107, 0
    %vm113 = vcmask 1043456
    %v115 = vsel %vm113, %v108, 0
    %117 = vmatprep.subr.bf16.mxu0 0
    %118 = vmatpush1.bf16.msra.mxu0 %v115
    %119 = vmatprep.subr.bf16.mxu0 0
    %120 = vmatpush1.bf16.msra.mxu0 0
    %121 = vmatprep.subr.bf16.mxu0 0
    %122 = vmatpush1.bf16.msra.mxu0 0
    %123 = vmatprep.subr.bf16.mxu0 0
    %124 = vmatpush1.bf16.msra.mxu0 0
    %125 = vmatprep.subr.bf16.mxu0 0
    %126 = vmatpush1.bf16.msra.mxu0 0
    %127 = vmatprep.subr.bf16.mxu0 0
    %128 = vmatpush1.bf16.msra.mxu0 0
    %129 = vmatprep.subr.bf16.mxu0 0
    %130 = vmatpush1.bf16.msra.mxu0 0
    %131 = vmatprep.subr.bf16.mxu0 0
    %132 = vmatpush1.bf16.msra.mxu0 0
    %133 = vmatprep.subr.bf16.mxu0 0
    %134 = vmatpush1.bf16.msra.mxu0 0
    %135 = vmatprep.subr.bf16.mxu0 0
    %136 = vmatpush1.bf16.msra.mxu0 0
    %137 = vmatprep.subr.bf16.mxu0 0
    %138 = vmatpush1.bf16.msra.mxu0 0
    %139 = vmatprep.subr.bf16.mxu0 0
    %140 = vmatpush1.bf16.msra.mxu0 0
    %141 = vmatprep.subr.bf16.mxu0 0
    %142 = vmatpush1.bf16.msra.mxu0 0
    %143 = vmatprep.subr.bf16.mxu0 0
    %144 = vmatpush1.bf16.msra.mxu0 0
    %145 = vmatprep.subr.bf16.mxu0 0
    %146 = vmatpush1.bf16.msra.mxu0 0
    %147 = vmatprep.subr.bf16.mxu0 0
    %148 = vmatpush1.bf16.msra.mxu0 0
    %149 = vmatprep.mubr.bf16.mxu0 0
    %150 = vmatmul.mubr.bf16.gmra.mrb[0].mxu0 %v111
    %v151 = vpop.f32.mrb[0].mxu0
    %v152 = vadd.f32 0.0, %v151
    %v153 = vpop.f32.mrb[0].mxu0
    %v154 = vpop.f32.mrb[0].mxu0
    %v155 = vadd.f32 0.0, %v154
    %v156 = vpop.f32.mrb[0].mxu0
    %157 = vdwg.mxu0
    %s158 = sld [smem:[#allocation5]]
    %v159 = vstv %s158
    %v160 = vmul.f32 %v152, %v159
    %v161 = vmul.f32 %v155, %v159
    %162 = vst [vmem:[#allocation6] sm:$0xff] %v160
    %163 = vst [vmem:[#allocation6 + $0x8] sm:$0xff] %v161
    // Predicated region
    $region14: #{tpu_custom_call.1} parent=1 // pred_check
      _
    $region15: #{tpu_custom_call.1} parent=1 // pred_check_branch
      %165 = sbr.rel (0) target = $region17
    $region16: #{tpu_custom_call.1} parent=1 // pred_region
      %s167 = ssub.s32 256, 256
      %168 = vsyncadd [#allocation7], %s167
      %s169 = sshll.u32 [#allocation6], 4
      %s170 = int_to_ptr.vmem [resolvable:$true] %s169
      %175 = dma.vmem_to_hbm [thread:$0]  %s170, 256, %s4, [#allocation7], 128, 128, 8
    $region17: #{tpu_custom_call.1} parent=1 // pred_fallthru
      _
    // Predicated region
    $region18: #{tpu_custom_call.1} parent=1 // pred_check
      _
    $region19: #{tpu_custom_call.1} parent=1 // pred_check_branch
      %177 = sbr.rel (0) target = $region21
    $region20: #{tpu_custom_call.1} parent=1 // pred_region
      %178 = dma.done [#allocation7], 256
    $region21: #{tpu_custom_call.1} parent=1 // pred_fallthru
      _
    %179 = vsyncpa [#allocation7], 1

</llo_original>
